<compile_context>
chip_gen: v7x
topology: tpu7x:2x2x1
jax: 0.10.0
libtpu: 0.0.40
codegen_flags: <defaults>
</compile_context>

<pallas_src>
import functools

import jax
import jax.numpy as jnp
from jax.experimental import pallas as pl
from jax.experimental.pallas import tpu as pltpu

_VMEM_LIMIT = 32 * 1024 * 1024      # safe on v5e/v6e/v7x
_BLOCK_BUDGET = 2 * 1024 * 1024     # target bytes per (rows, L) block (native dtype)
_PASS1_BLOCK_CAP = 6 * 1024 * 1024  # cap for the BN-rows-only stats block


def _pick_row_tile(M, L, itemsize, smul):
    """Largest divisor of M that is a multiple of `smul` and fits the block budget.

    Prefers >=2 tiles (so a 2-TensorCore chip gets work on both cores).  Falls back
    to M itself (block dim == full dim is always legal) when no such divisor exists.
    """
    cands = [d for d in range(smul, M + 1, smul) if M % d == 0]
    if not cands:
        return M
    fit = [d for d in cands if d * L * itemsize <= _BLOCK_BUDGET]
    if not fit:
        return cands[0]
    multi = [d for d in fit if M // d >= 2]
    return max(multi) if multi else max(fit)


# ----------------------------------------------------------------------------
# Stats pass (training only), primary path: read ONLY the BatchNorm rows.
# Rows for batch n are [n*C + half, n*C + C); valid when that offset is a multiple
# of the block height cbn (always true for even C) and cbn respects sublane tiling.
# ----------------------------------------------------------------------------
def _bn_stats_bn_rows_only(x2d, N, C, half):
    cbn = C - half
    M, L = x2d.shape

    def kernel(x_ref, o_ref):
        xt = x_ref[...].astype(jnp.float32)                  # (cbn, L)
        s = jnp.sum(xt, axis=1, keepdims=True)               # (cbn, 1)
        q = jnp.sum(xt * xt, axis=1, keepdims=True)          # (cbn, 1)
        o_ref[...] = jnp.concatenate([s, q], axis=1)         # (cbn, 2)

    out = pl.pallas_call(
        kernel,
        out_shape=jax.ShapeDtypeStruct((N * cbn, 2), jnp.float32),
        grid_spec=pltpu.PrefetchScalarGridSpec(
            num_scalar_prefetch=0,
            grid=(N,),
            in_specs=[pl.BlockSpec((cbn, L),
                                   lambda n: ((n * C + half) // cbn, 0))],
            out_specs=pl.BlockSpec((cbn, 2), lambda n: (n, 0)),
        ),
        compiler_params=pltpu.CompilerParams(
            dimension_semantics=("parallel",),
            vmem_limit_bytes=_VMEM_LIMIT),
    )(x2d)
    out = out.reshape(N, cbn, 2)
    return jnp.sum(out[..., 0], axis=0), jnp.sum(out[..., 1], axis=0)


# ----------------------------------------------------------------------------
# Stats pass fallback: per-row sum / sum-of-squares over ALL rows (full-L blocks).
# ----------------------------------------------------------------------------
def _row_stats_all(x2d, tm):
    M, L = x2d.shape

    def kernel(x_ref, o_ref):
        xt = x_ref[...].astype(jnp.float32)                  # (tm, L)
        s = jnp.sum(xt, axis=1, keepdims=True)
        q = jnp.sum(xt * xt, axis=1, keepdims=True)
        o_ref[...] = jnp.concatenate([s, q], axis=1)         # (tm, 2)

    return pl.pallas_call(
        kernel,
        out_shape=jax.ShapeDtypeStruct((M, 2), jnp.float32),
        grid_spec=pltpu.PrefetchScalarGridSpec(
            num_scalar_prefetch=0,
            grid=(M // tm,),
            in_specs=[pl.BlockSpec((tm, L), lambda i: (i, 0))],
            out_specs=pl.BlockSpec((tm, 2), lambda i: (i, 0)),
        ),
        compiler_params=pltpu.CompilerParams(
            dimension_semantics=("parallel",),
            vmem_limit_bytes=_VMEM_LIMIT),
    )(x2d)


# ----------------------------------------------------------------------------
# Fused normalize pass: one read of x, in-kernel per-row (IN) stats, one write.
#   IN rows (flag=1): y = (x - mean_row) * a * rsqrt(var_row + eps) + b
#   BN rows (flag=0): y = x * a + b            (a, b precomputed from batch stats)
# ----------------------------------------------------------------------------
def _fused_normalize(x2d, a_row, b_row, f_row, eps, tm):
    M, L = x2d.shape
    inv_l = 1.0 / float(L)

    def kernel(x_ref, a_ref, b_ref, f_ref, o_ref):
        xt = x_ref[...].astype(jnp.float32)                  # (tm, L)
        mean = jnp.sum(xt, axis=1, keepdims=True) * inv_l    # (tm, 1)
        xc = xt - mean
        var = jnp.sum(xc * xc, axis=1, keepdims=True) * inv_l
        rstd = jax.lax.rsqrt(var + eps)
        f = f_ref[...]                                       # (tm, 1) in {0,1}
        scale = a_ref[...] * (f * rstd + (1.0 - f))
        o_ref[...] = ((xt - f * mean) * scale + b_ref[...]).astype(o_ref.dtype)

    return pl.pallas_call(
        kernel,
        out_shape=jax.ShapeDtypeStruct((M, L), x2d.dtype),
        grid_spec=pltpu.PrefetchScalarGridSpec(
            num_scalar_prefetch=0,
            grid=(M // tm,),
            in_specs=[pl.BlockSpec((tm, L), lambda i: (i, 0)),
                      pl.BlockSpec((tm, 1), lambda i: (i, 0)),
                      pl.BlockSpec((tm, 1), lambda i: (i, 0)),
                      pl.BlockSpec((tm, 1), lambda i: (i, 0))],
            out_specs=pl.BlockSpec((tm, L), lambda i: (i, 0)),
        ),
        compiler_params=pltpu.CompilerParams(
            dimension_semantics=("parallel",),
            vmem_limit_bytes=_VMEM_LIMIT),
    )(x2d, a_row, b_row, f_row)


# ----------------------------------------------------------------------------
# IBN forward
# ----------------------------------------------------------------------------
def ibn_forward(x_nchw, params, training=True, eps=1e-5):
    N, C, H, W = x_nchw.shape
    half = C // 2
    cbn = C - half
    M, L = N * C, H * W
    itemsize = jnp.dtype(x_nchw.dtype).itemsize
    smul = max(8, 32 // itemsize)            # sublane tile multiple for this dtype

    x2d = x_nchw.reshape(M, L)               # leading-dim reshape, no pad, no slice
    tm = _pick_row_tile(M, L, itemsize, smul)

    in_w = params['in_weight'].astype(jnp.float32)
    in_b = params['in_bias'].astype(jnp.float32)
    bn_w = params['bn_weight'].astype(jnp.float32)
    bn_b = params['bn_bias'].astype(jnp.float32)

    # ---- BatchNorm statistics for channels [half:] ----
    if training:
        bn_rows_ok = (cbn % smul == 0
                      and C % cbn == 0 and half % cbn == 0
                      and cbn * L * itemsize <= _PASS1_BLOCK_CAP)
        if bn_rows_ok:
            bn_sum, bn_ssq = _bn_stats_bn_rows_only(x2d, N, C, half)
        else:
            rs = _row_stats_all(x2d, tm).reshape(N, C, 2)
            bn_sum = jnp.sum(rs[:, half:, 0], axis=0)
            bn_ssq = jnp.sum(rs[:, half:, 1], axis=0)
        cnt = float(N * L)
        bn_mean = bn_sum / cnt
        bn_var = bn_ssq / cnt - bn_mean * bn_mean          # biased, as PyTorch
    else:
        bn_mean = params['bn_running_mean'].astype(jnp.float32)
        bn_var = params['bn_running_var'].astype(jnp.float32)

    bn_scale = bn_w * jax.lax.rsqrt(bn_var + eps)          # (C-half,)
    bn_shift = bn_b - bn_mean * bn_scale

    # ---- Per-row fused affine parameters (tiny O(N*C) glue) ----
    a_ch = jnp.concatenate([in_w, bn_scale])               # (C,)
    b_ch = jnp.concatenate([in_b, bn_shift])               # (C,)
    f_ch = jnp.concatenate([jnp.ones((half,), jnp.float32),
                            jnp.zeros((cbn,), jnp.float32)])
    a_row = jnp.broadcast_to(a_ch[None, :], (N, C)).reshape(M, 1)
    b_row = jnp.broadcast_to(b_ch[None, :], (N, C)).reshape(M, 1)
    f_row = jnp.broadcast_to(f_ch[None, :], (N, C)).reshape(M, 1)

    # ---- Fused read -> normalize -> write pass ----
    y2d = _fused_normalize(x2d, a_row, b_row, f_row, eps, tm)
    return y2d.reshape(N, C, H, W)


# ----------------------------------------------------------------------------
# Pure-jnp reference (for correctness check)
# ----------------------------------------------------------------------------
def ibn_reference(x, params, training=True, eps=1e-5):
    N, C, H, W = x.shape
    half = C // 2
    x1, x2 = x[:, :half], x[:, half:]

    m = jnp.mean(x1, axis=(2, 3), keepdims=True)
    v = jnp.var(x1, axis=(2, 3), keepdims=True)
    o1 = (x1 - m) / jnp.sqrt(v + eps)
    o1 = o1 * params['in_weight'][None, :, None, None] \
        + params['in_bias'][None, :, None, None]

    if training:
        bm = jnp.mean(x2, axis=(0, 2, 3), keepdims=True)
        bv = jnp.var(x2, axis=(0, 2, 3), keepdims=True)
    else:
        bm = params['bn_running_mean'][None, :, None, None]
        bv = params['bn_running_var'][None, :, None, None]
    o2 = (x2 - bm) / jnp.sqrt(bv + eps)
    o2 = o2 * params['bn_weight'][None, :, None, None] \
        + params['bn_bias'][None, :, None, None]
    return jnp.concatenate([o1, o2], axis=1)


if __name__ == "__main__":
    key = jax.random.PRNGKey(0)

    def make_case(k, N, C, H, W):
        half = C // 2
        ks = jax.random.split(k, 5)
        x = jax.random.normal(ks[0], (N, C, H, W), jnp.float32)
        params = {
            'in_weight': 1.0 + 0.1 * jax.random.normal(ks[1], (half,), jnp.float32),
            'in_bias': 0.1 * jax.random.normal(ks[2], (half,), jnp.float32),
            'bn_weight': 1.0 + 0.1 * jax.random.normal(ks[3], (C - half,), jnp.float32),
            'bn_bias': 0.1 * jax.random.normal(ks[4], (C - half,), jnp.float32),
            'bn_running_mean': 0.05 * jnp.arange(C - half, dtype=jnp.float32),
            'bn_running_var': 1.0 + 0.02 * jnp.arange(C - half, dtype=jnp.float32),
        }
        return x, params

    # Case 0 (required small shape) exercises the all-rows stats fallback;
    # case 1 exercises the BN-rows-only stats path.
    cases = [(2, 4, 16, 16), (2, 16, 8, 8)]
    for idx, shp in enumerate(cases):
        x, params = make_case(jax.random.fold_in(key, idx), *shp)
        for training in (True, False):
            fwd = jax.jit(functools.partial(ibn_forward, training=training))
            out = jax.block_until_ready(fwd(x, params))
            ref = ibn_reference(x, params, training=training)
            assert out.shape == x.shape, (out.shape, x.shape)
            assert bool(jnp.all(jnp.isfinite(out)))
            err = float(jnp.max(jnp.abs(out - ref)))
            assert err < 2e-4, (shp, training, err)
    print("KERNEL_OK")
</pallas_src>

<mosaic_0001>
module attributes {stable_mosaic.version = 11 : i64} {
  func.func @kernel(%arg0: i32, %arg1: memref<8x256xf32, #tpu.memory_space<vmem>>, %arg2: memref<8x2xf32, #tpu.memory_space<vmem>>) attributes {dimension_semantics = [#tpu.dimension_semantics<parallel>], iteration_bounds = array<i64: 1>, scalar_prefetch = 0 : i64, scratch_operands = 0 : i64, tpu.core_type = #tpu.core_type<tc>, window_params = [{transform_indices = @transform_0, window_bounds = array<i64: 8, 256>}, {transform_indices = @transform_1, window_bounds = array<i64: 8, 2>}]} {
    %c0 = arith.constant 0 : index
    %c0_0 = arith.constant 0 : index
    %0 = vector.load %arg1[%c0, %c0_0] : memref<8x256xf32, #tpu.memory_space<vmem>>, vector<8x256xf32>
    %cst = arith.constant dense<0.000000e+00> : vector<8xf32>
    %1 = vector.multi_reduction <add>, %0, %cst [1] : vector<8x256xf32> to vector<8xf32>
    %2 = vector.shape_cast %1 : vector<8xf32> to vector<8x1xf32>
    %3 = arith.mulf %0, %0 : vector<8x256xf32>
    %cst_1 = arith.constant dense<0.000000e+00> : vector<8xf32>
    %4 = vector.multi_reduction <add>, %3, %cst_1 [1] : vector<8x256xf32> to vector<8xf32>
    %5 = vector.shape_cast %4 : vector<8xf32> to vector<8x1xf32>
    %6 = tpu.concatenate %2, %5 in 1 : vector<8x1xf32>, vector<8x1xf32> -> vector<8x2xf32>
    %c0_2 = arith.constant 0 : index
    %c0_3 = arith.constant 0 : index
    %7 = vector.load %arg2[%c0_2, %c0_3] : memref<8x2xf32, #tpu.memory_space<vmem>>, vector<8x2xf32>
    tpu.vector_store %arg2[%c0_2, %c0_3], %6 {strides = array<i32>} : memref<8x2xf32, #tpu.memory_space<vmem>>, vector<8x2xf32>,
    return
  }
  func.func @transform_0(%arg0: i32) -> (i32, i32) {
    %c0_i32 = arith.constant 0 : i32
    %c0_i32_0 = arith.constant 0 : i32
    return %arg0, %c0_i32 : i32, i32
  }
  func.func @transform_1(%arg0: i32) -> (i32, i32) {
    %c0_i32 = arith.constant 0 : i32
    %c0_i32_0 = arith.constant 0 : i32
    return %arg0, %c0_i32 : i32, i32
  }
}

module attributes {stable_mosaic.version = 11 : i64} {
  func.func @kernel(%arg0: i32, %arg1: memref<8x256xf32, #tpu.memory_space<vmem>>, %arg2: memref<8x1xf32, #tpu.memory_space<vmem>>, %arg3: memref<8x1xf32, #tpu.memory_space<vmem>>, %arg4: memref<8x1xf32, #tpu.memory_space<vmem>>, %arg5: memref<8x256xf32, #tpu.memory_space<vmem>>) attributes {dimension_semantics = [#tpu.dimension_semantics<parallel>], iteration_bounds = array<i64: 1>, scalar_prefetch = 0 : i64, scratch_operands = 0 : i64, tpu.core_type = #tpu.core_type<tc>, window_params = [{transform_indices = @transform_0, window_bounds = array<i64: 8, 256>}, {transform_indices = @transform_1, window_bounds = array<i64: 8, 1>}, {transform_indices = @transform_2, window_bounds = array<i64: 8, 1>}, {transform_indices = @transform_3, window_bounds = array<i64: 8, 1>}, {transform_indices = @transform_4, window_bounds = array<i64: 8, 256>}]} {
    %c0 = arith.constant 0 : index
    %c0_0 = arith.constant 0 : index
    %0 = vector.load %arg1[%c0, %c0_0] : memref<8x256xf32, #tpu.memory_space<vmem>>, vector<8x256xf32>
    %cst = arith.constant dense<0.000000e+00> : vector<8xf32>
    %1 = vector.multi_reduction <add>, %0, %cst [1] : vector<8x256xf32> to vector<8xf32>
    %2 = vector.shape_cast %1 : vector<8xf32> to vector<8x1xf32>
    %cst_1 = arith.constant 3.906250e-03 : f32
    %3 = vector.broadcast %cst_1 : f32 to vector<8x1xf32>
    %4 = arith.mulf %2, %3 : vector<8x1xf32>
    %5 = vector.broadcast %4 : vector<8x1xf32> to vector<8x256xf32>
    %6 = arith.subf %0, %5 : vector<8x256xf32>
    %7 = arith.mulf %6, %6 : vector<8x256xf32>
    %cst_2 = arith.constant dense<0.000000e+00> : vector<8xf32>
    %8 = vector.multi_reduction <add>, %7, %cst_2 [1] : vector<8x256xf32> to vector<8xf32>
    %9 = vector.shape_cast %8 : vector<8xf32> to vector<8x1xf32>
    %cst_3 = arith.constant 3.906250e-03 : f32
    %10 = vector.broadcast %cst_3 : f32 to vector<8x1xf32>
    %11 = arith.mulf %9, %10 : vector<8x1xf32>
    %cst_4 = arith.constant 9.99999974E-6 : f32
    %12 = vector.broadcast %cst_4 : f32 to vector<8x1xf32>
    %13 = arith.addf %11, %12 : vector<8x1xf32>
    %14 = math.rsqrt %13 : vector<8x1xf32>
    %c0_5 = arith.constant 0 : index
    %c0_6 = arith.constant 0 : index
    %15 = vector.load %arg4[%c0_5, %c0_6] : memref<8x1xf32, #tpu.memory_space<vmem>>, vector<8x1xf32>
    %c0_7 = arith.constant 0 : index
    %c0_8 = arith.constant 0 : index
    %16 = vector.load %arg2[%c0_7, %c0_8] : memref<8x1xf32, #tpu.memory_space<vmem>>, vector<8x1xf32>
    %17 = arith.mulf %15, %14 : vector<8x1xf32>
    %cst_9 = arith.constant 1.000000e+00 : f32
    %18 = vector.broadcast %cst_9 : f32 to vector<8x1xf32>
    %19 = arith.subf %18, %15 : vector<8x1xf32>
    %20 = arith.addf %17, %19 : vector<8x1xf32>
    %21 = arith.mulf %16, %20 : vector<8x1xf32>
    %22 = arith.mulf %15, %4 : vector<8x1xf32>
    %23 = vector.broadcast %22 : vector<8x1xf32> to vector<8x256xf32>
    %24 = arith.subf %0, %23 : vector<8x256xf32>
    %25 = vector.broadcast %21 : vector<8x1xf32> to vector<8x256xf32>
    %26 = arith.mulf %24, %25 : vector<8x256xf32>
    %c0_10 = arith.constant 0 : index
    %c0_11 = arith.constant 0 : index
    %27 = vector.load %arg3[%c0_10, %c0_11] : memref<8x1xf32, #tpu.memory_space<vmem>>, vector<8x1xf32>
    %28 = vector.broadcast %27 : vector<8x1xf32> to vector<8x256xf32>
    %29 = arith.addf %26, %28 : vector<8x256xf32>
    %c0_12 = arith.constant 0 : index
    %c0_13 = arith.constant 0 : index
    %30 = vector.load %arg5[%c0_12, %c0_13] : memref<8x256xf32, #tpu.memory_space<vmem>>, vector<8x256xf32>
    tpu.vector_store %arg5[%c0_12, %c0_13], %29 {strides = array<i32>} : memref<8x256xf32, #tpu.memory_space<vmem>>, vector<8x256xf32>,
    return
  }
  func.func @transform_0(%arg0: i32) -> (i32, i32) {
    %c0_i32 = arith.constant 0 : i32
    %c0_i32_0 = arith.constant 0 : i32
    return %arg0, %c0_i32 : i32, i32
  }
  func.func @transform_1(%arg0: i32) -> (i32, i32) {
    %c0_i32 = arith.constant 0 : i32
    %c0_i32_0 = arith.constant 0 : i32
    return %arg0, %c0_i32 : i32, i32
  }
  func.func @transform_2(%arg0: i32) -> (i32, i32) {
    %c0_i32 = arith.constant 0 : i32
    %c0_i32_0 = arith.constant 0 : i32
    return %arg0, %c0_i32 : i32, i32
  }
  func.func @transform_3(%arg0: i32) -> (i32, i32) {
    %c0_i32 = arith.constant 0 : i32
    %c0_i32_0 = arith.constant 0 : i32
    return %arg0, %c0_i32 : i32, i32
  }
  func.func @transform_4(%arg0: i32) -> (i32, i32) {
    %c0_i32 = arith.constant 0 : i32
    %c0_i32_0 = arith.constant 0 : i32
    return %arg0, %c0_i32 : i32, i32
  }
}

</mosaic_0001>

<llo_original>
// kernel: ibn_forward.2
$region0: #{ibn_forward.2}
  #allocation0 [shape = 'u32[]', space=smem, size = 0x4, offset = 0x4, fixed_abs, tag = 'smem constant byte address 0x4 - core index']
  #allocation1 [shape = 'u32[144,128]{1,0:T(1,128)}', space=vmem, size = 0x12000, scoped, tag = 'internal scratch']
  %s0 = inlined_call_operand.vmem [shape: f32[8,256], index: 0, kind: input, shape index: {}]
  %s1 = inlined_call_operand.vmem [shape: f32[8,2], index: 1, kind: output, shape index: {}]
  %s2 = sld [smem:[#allocation0]]
  $region14: #{ibn_forward.2} parent=0
    _
  %s4 = ssub.s32 1, %s2
  %s5 = scalar_select 0, %s4, %s2
  // Predicated region
  $region2: #{ibn_forward.2} parent=0 // pred_check
    _
  $region3: #{ibn_forward.2} parent=0 // pred_check_branch
    %7 = sbr.rel (0) target = $region5
  $region4: #{ibn_forward.2} parent=0 // pred_region
    _
  $region5: #{ibn_forward.2} parent=0 // pred_fallthru
    _
  %v8 = vld [vmem:[%s0] sm:$0xff]
  %v9 = vld [vmem:[%s0 + $0x8] sm:$0xff]
  %v10 = vadd.f32 %v8, %v9
  %11 = vadd.xlane.f32.xlu0 %v10
  %v12 = vpop.xlane.xlu0 %11
  %v13 = vmul.f32 %v8, %v8
  %v14 = vmul.f32 %v9, %v9
  %v15 = vadd.f32 %v13, %v14
  %16 = vadd.xlane.f32.xlu0 %v15
  %v17 = vpop.xlane.xlu0 %16
  %vm18 = vcmask 7168
  %v19 = vsel %vm18, %v12, %v17
  %vm20 = vcmask 15360
  %21 = vst.msk [vmem:[%s1] sm:$0xff] %vm20, %v19
  // Predicated region
  $region6: #{ibn_forward.2} parent=0 // pred_check
    _
  $region7: #{ibn_forward.2} parent=0 // pred_check_branch
    %23 = sbr.rel (0) target = $region9
  $region8: #{ibn_forward.2} parent=0 // pred_region
    _
  $region9: #{ibn_forward.2} parent=0 // pred_fallthru
    _
  // Predicated region
  $region10: #{ibn_forward.2} parent=0 // pred_check
    _
  $region11: #{ibn_forward.2} parent=0 // pred_check_branch
    %25 = sbr.rel (0) target = $region13
  $region12: #{ibn_forward.2} parent=0 // pred_region
    _
  $region13: #{ibn_forward.2} parent=0 // pred_fallthru
    _

// kernel: ibn_forward.3
$region0: #{ibn_forward.3}
  #allocation0 [shape = 'u32[]', space=smem, size = 0x4, offset = 0x4, fixed_abs, tag = 'smem constant byte address 0x4 - core index']
  #allocation1 [shape = 'u32[144,128]{1,0:T(1,128)}', space=vmem, size = 0x12000, scoped, tag = 'internal scratch']
  %s0 = inlined_call_operand.vmem [shape: f32[8,256], index: 0, kind: input, shape index: {}]
  %s1 = inlined_call_operand.vmem [shape: f32[8,1], index: 1, kind: input, shape index: {}]
  %s2 = inlined_call_operand.vmem [shape: f32[8,1], index: 2, kind: input, shape index: {}]
  %s3 = inlined_call_operand.vmem [shape: f32[8,1], index: 3, kind: input, shape index: {}]
  %s4 = inlined_call_operand.vmem [shape: f32[8,256], index: 4, kind: output, shape index: {}]
  %s5 = sld [smem:[#allocation0]]
  $region26: #{ibn_forward.3} parent=0
    _
  %s7 = ssub.s32 1, %s5
  %s8 = scalar_select 0, %s7, %s5
  // Predicated region
  $region2: #{ibn_forward.3} parent=0 // pred_check
    _
  $region3: #{ibn_forward.3} parent=0 // pred_check_branch
    %10 = sbr.rel (0) target = $region5
  $region4: #{ibn_forward.3} parent=0 // pred_region
    _
  $region5: #{ibn_forward.3} parent=0 // pred_fallthru
    _
  // Predicated region
  $region6: #{ibn_forward.3} parent=0 // pred_check
    _
  $region7: #{ibn_forward.3} parent=0 // pred_check_branch
    %12 = sbr.rel (0) target = $region9
  $region8: #{ibn_forward.3} parent=0 // pred_region
    _
  $region9: #{ibn_forward.3} parent=0 // pred_fallthru
    _
  // Predicated region
  $region10: #{ibn_forward.3} parent=0 // pred_check
    _
  $region11: #{ibn_forward.3} parent=0 // pred_check_branch
    %14 = sbr.rel (0) target = $region13
  $region12: #{ibn_forward.3} parent=0 // pred_region
    _
  $region13: #{ibn_forward.3} parent=0 // pred_fallthru
    _
  // Predicated region
  $region14: #{ibn_forward.3} parent=0 // pred_check
    _
  $region15: #{ibn_forward.3} parent=0 // pred_check_branch
    %16 = sbr.rel (0) target = $region17
  $region16: #{ibn_forward.3} parent=0 // pred_region
    _
  $region17: #{ibn_forward.3} parent=0 // pred_fallthru
    _
  %v17 = vld [vmem:[%s0] sm:$0xff]
  %v18 = vld [vmem:[%s0 + $0x8] sm:$0xff]
  %v19 = vadd.f32 %v17, %v18
  %20 = vadd.xlane.f32.xlu0 %v19
  %v21 = vpop.xlane.xlu0 %20
  %v22 = vmul.f32 %v21, 0.00390625
  %v23 = vsub.f32 %v17, %v22
  %v24 = vsub.f32 %v18, %v22
  %v25 = vmul.f32 %v23, %v23
  %v26 = vmul.f32 %v24, %v24
  %v27 = vadd.f32 %v25, %v26
  %28 = vadd.xlane.f32.xlu0 %v27
  %v29 = vpop.xlane.xlu0 %28
  %v30 = vmul.f32 %v29, 0.00390625
  %v31 = vadd.f32 %v30, 1e-05
  %v32 = vrsqrt.pop %v31
  %v33 = vld [vmem:[%s3] sm:$0xff]
  %v34 = vld [vmem:[%s1] sm:$0xff]
  %v35 = vmul.f32 %v33, %v32
  %v36 = vsub.f32 1.0, %v33
  %v37 = vadd.f32 %v35, %v36
  %v38 = vmul.f32 %v34, %v37
  %v39 = vmul.f32 %v33, %v22
  %41 = vset.pattern.permute.xlu0 0
  %42 = vperm.xlu0 %41, %v39
  %v43 = vpop.permute.xlu0 %42
  %v45 = vsub.f32 %v17, %v43
  %v46 = vsub.f32 %v18, %v43
  %48 = vset.pattern.permute.xlu0 0
  %49 = vperm.xlu0 %48, %v38
  %v50 = vpop.permute.xlu0 %49
  %v52 = vmul.f32 %v45, %v50
  %v53 = vmul.f32 %v46, %v50
  %v54 = vld [vmem:[%s2] sm:$0xff]
  %56 = vset.pattern.permute.xlu0 0
  %57 = vperm.xlu0 %56, %v54
  %v58 = vpop.permute.xlu0 %57
  %v60 = vadd.f32 %v52, %v58
  %v61 = vadd.f32 %v53, %v58
  %62 = vst [vmem:[%s4] sm:$0xff] %v60
  %63 = vst [vmem:[%s4 + $0x8] sm:$0xff] %v61
  // Predicated region
  $region18: #{ibn_forward.3} parent=0 // pred_check
    _
  $region19: #{ibn_forward.3} parent=0 // pred_check_branch
    %65 = sbr.rel (0) target = $region21
  $region20: #{ibn_forward.3} parent=0 // pred_region
    _
  $region21: #{ibn_forward.3} parent=0 // pred_fallthru
    _
  // Predicated region
  $region22: #{ibn_forward.3} parent=0 // pred_check
    _
  $region23: #{ibn_forward.3} parent=0 // pred_check_branch
    %67 = sbr.rel (0) target = $region25
  $region24: #{ibn_forward.3} parent=0 // pred_region
    _
  $region25: #{ibn_forward.3} parent=0 // pred_fallthru
    _

</llo_original>
